<compile_context>
chip_gen: v7x
topology: tpu7x:2x2x1
jax: 0.10.0
libtpu: 0.0.40
codegen_flags: <defaults>
</compile_context>

<pallas_src>
from collections import OrderedDict

import numpy as np
import jax
import jax.numpy as jnp
from jax.experimental import pallas as pl
from jax.experimental.pallas import tpu as pltpu


def _merge_dropout_ranges(supp_specs):
    """supp_specs: list of (channels, apply_dropout) in concatenation order.
    Returns merged contiguous (start, end) column ranges (within the supplement slab)
    that receive dropout, and the total supplement channel count."""
    ranges = []
    off = 0
    for c, use_dropout in supp_specs:
        if c == 0:
            continue
        if use_dropout:
            if ranges and ranges[-1][1] == off:
                ranges[-1] = (ranges[-1][0], off + c)
            else:
                ranges.append((off, off + c))
        off += c
    return ranges, off


def _make_supplement_kernel(in_channels, supp_channels, dropout_ranges, keep_prob,
                            tile_rows):
    """Build the kernel: concat passthrough + (masked) inverted dropout on the slab."""
    apply_dropout = (keep_prob < 1.0) and len(dropout_ranges) > 0
    full_dropout = (apply_dropout
                    and len(dropout_ranges) == 1
                    and dropout_ranges[0] == (0, supp_channels))

    def _mix32(h):
        # 32-bit integer finalizer ("lowbias32"); uint32 arithmetic wraps mod 2**32.
        h = h ^ (h >> jnp.uint32(16))
        h = h * jnp.uint32(0x7FEB352D)
        h = h ^ (h >> jnp.uint32(15))
        h = h * jnp.uint32(0x846CA68B)
        h = h ^ (h >> jnp.uint32(16))
        return h

    def kernel(seed_ref, x_ref, supp_ref, o_ref):
        # Pass-through slab: a straight aligned copy (dominates bytes moved), no compute.
        o_ref[:, :in_channels] = x_ref[...]

        v = supp_ref[...]
        if apply_dropout:
            rows, cols = v.shape
            # Global element coordinates -> mask independent of the tiling choice.
            row = jax.lax.broadcasted_iota(jnp.int32, (rows, cols), 0)
            row = row + pl.program_id(0) * tile_rows
            col = jax.lax.broadcasted_iota(jnp.int32, (rows, cols), 1)
            seed = seed_ref[0]

            # Counter-based hash -> uniform bits per element.
            h = (row.astype(jnp.uint32) * jnp.uint32(0x9E3779B1)
                 ^ col.astype(jnp.uint32) * jnp.uint32(0x85EBCA77)
                 ^ seed.astype(jnp.uint32) * jnp.uint32(0xC2B2AE3D))
            bits = _mix32(_mix32(h) + jnp.uint32(0x27D4EB2F))

            if keep_prob <= 0.0:
                dropped = jnp.zeros_like(v)
            else:
                # Integer-threshold keep test on the top 24 bits (signed-safe compare).
                u24 = (bits >> jnp.uint32(8)).astype(jnp.int32)
                thresh = jnp.int32(min(int(keep_prob * float(1 << 24)), (1 << 24) - 1))
                keep = u24 < thresh
                scale = jnp.asarray(1.0 / keep_prob, v.dtype)
                dropped = jnp.where(keep, v * scale, jnp.zeros_like(v))

            if full_dropout:
                v = dropped
            else:
                # Static column mask selecting the dropout'd keys' channel ranges.
                in_drop = None
                for s, e in dropout_ranges:
                    rng = (col >= s) & (col < e)
                    in_drop = rng if in_drop is None else (in_drop | rng)
                v = jnp.where(in_drop, dropped, v)

        # Single lane-dense store for the whole supplement slab.
        o_ref[:, in_channels:] = v

    return kernel


class BertOutputSupplementPallas:
    """JAX/Pallas port of BertOutputSupplement (forward only)."""

    def __init__(self, in_channels, supplemental_dropout_prob,
                 is_sequence_supplement, supplement_key_to_shape,
                 skip_dropout_keys=None):
        self.in_channels = int(in_channels)
        self.dropout_prob = float(supplemental_dropout_prob)
        self.is_sequence_supplement = bool(is_sequence_supplement)
        self.supplement_key_to_shape = OrderedDict()
        if supplement_key_to_shape is not None:
            self.supplement_key_to_shape.update(supplement_key_to_shape)
        self.skip_dropout_keys = set()
        if skip_dropout_keys is not None:
            self.skip_dropout_keys.update(skip_dropout_keys)

    def supplement_channels(self):
        return sum(int(np.prod(self.supplement_key_to_shape[k]))
                   for k in self.supplement_key_to_shape)

    def out_channels(self):
        return self.in_channels + self.supplement_channels()

    def __call__(self, x, batch, *, seed=0, training=True):
        # ---- glue: flatten leading dims, reshape + concat supplements (plain JAX) ----
        n_lead = 2 if self.is_sequence_supplement else 1
        lead_shape = x.shape[:n_lead]
        assert x.shape[n_lead] == self.in_channels
        n_rows = int(np.prod(lead_shape))
        x2 = x.reshape(n_rows, self.in_channels)

        supp_arrays = []
        supp_specs = []
        for key in self.supplement_key_to_shape:
            c = int(np.prod(self.supplement_key_to_shape[key]))
            values = batch[key]
            values = values.reshape(values.shape[:n_lead] + (c,)).astype(x.dtype)
            supp_arrays.append(values.reshape(n_rows, c))
            supp_specs.append((c, (key not in self.skip_dropout_keys) and training))

        if not supp_arrays:           # torch.cat([x]) == x
            return x

        supp2 = (supp_arrays[0] if len(supp_arrays) == 1
                 else jnp.concatenate(supp_arrays, axis=1))
        dropout_ranges, supp_c = _merge_dropout_ranges(supp_specs)
        out_c = self.out_channels()
        keep_prob = 1.0 - self.dropout_prob

        # ---- row-tile size: budget double-buffered VMEM (safe on v7x's 64 MiB) ----
        itemsize = jnp.dtype(x.dtype).itemsize
        bytes_per_row = (self.in_channels + supp_c + out_c) * itemsize
        budget = 12 * 1024 * 1024      # per-buffer; x2 for double buffering ≈ 24 MiB
        tr = min(2048, max(8, budget // (2 * bytes_per_row)))
        tr -= tr % 8
        if n_rows <= tr:
            tr = n_rows                # full-extent block is always legal
        grid = (pl.cdiv(n_rows, tr),)

        kernel = _make_supplement_kernel(self.in_channels, supp_c, dropout_ranges,
                                         keep_prob, tr)
        seed_arr = jnp.asarray([seed], dtype=jnp.int32)

        out2 = pl.pallas_call(
            kernel,
            out_shape=jax.ShapeDtypeStruct((n_rows, out_c), x.dtype),
            grid_spec=pltpu.PrefetchScalarGridSpec(
                num_scalar_prefetch=1,
                grid=grid,
                in_specs=[
                    pl.BlockSpec((tr, self.in_channels), lambda i, seed: (i, 0)),
                    pl.BlockSpec((tr, supp_c), lambda i, seed: (i, 0)),
                ],
                out_specs=pl.BlockSpec((tr, out_c), lambda i, seed: (i, 0)),
            ),
            compiler_params=pltpu.CompilerParams(
                dimension_semantics=("parallel",)),
        )(seed_arr, x2, supp2)

        return out2.reshape(lead_shape + (out_c,))


if __name__ == "__main__":
    key = jax.random.PRNGKey(0)

    B, S, C = 2, 8, 32
    # supplements: feat_a has shape (3,) -> 3 channels (gets dropout),
    #              feat_b has shape (2,2) -> 4 channels (skips dropout)
    module = BertOutputSupplementPallas(
        in_channels=C,
        supplemental_dropout_prob=0.1,
        is_sequence_supplement=True,
        supplement_key_to_shape=OrderedDict([("feat_a", (3,)), ("feat_b", (2, 2))]),
        skip_dropout_keys={"feat_b"},
    )

    k1, k2, k3 = jax.random.split(key, 3)
    x = jax.random.normal(k1, (B, S, C), dtype=jnp.float32)
    batch = {
        "feat_a": jax.random.normal(k2, (B, S, 3), dtype=jnp.float32),
        "feat_b": jax.random.normal(k3, (B, S, 2, 2), dtype=jnp.float32),
    }

    # --- training=True path (dropout active on feat_a) ---
    out = module(x, batch, seed=1234, training=True)
    out = jax.block_until_ready(out)

    assert out.shape == (B, S, module.out_channels()), out.shape
    # passthrough slab is a bitwise copy
    np.testing.assert_array_equal(np.asarray(out[..., :C]), np.asarray(x))
    # feat_b skips dropout -> exact copy of its flattened values
    feat_b_flat = np.asarray(batch["feat_b"]).reshape(B, S, 4)
    np.testing.assert_array_equal(np.asarray(out[..., C + 3:]), feat_b_flat)
    # feat_a: every element is either dropped (0) or scaled by 1/keep_prob
    feat_a = np.asarray(batch["feat_a"]).reshape(B, S, 3)
    out_a = np.asarray(out[..., C:C + 3])
    keep_scale = 1.0 / (1.0 - module.dropout_prob)
    ok = np.isclose(out_a, feat_a * keep_scale, rtol=1e-5, atol=1e-6) | (out_a == 0.0)
    assert ok.all(), "dropout slab values are neither zero nor scaled input"

    # --- training=False path (pure concat) ---
    out_eval = jax.block_until_ready(module(x, batch, seed=1234, training=False))
    np.testing.assert_array_equal(np.asarray(out_eval[..., C:C + 3]), feat_a)
    np.testing.assert_array_equal(np.asarray(out_eval[..., C + 3:]), feat_b_flat)
    np.testing.assert_array_equal(np.asarray(out_eval[..., :C]), np.asarray(x))

    print("KERNEL_OK")
</pallas_src>

<mosaic_0001>
module attributes {stable_mosaic.version = 11 : i64} {
  func.func @kernel(%arg0: i32, %arg1: memref<1xi32, #tpu.memory_space<smem>>, %arg2: memref<16x32xf32, #tpu.memory_space<vmem>>, %arg3: memref<16x7xf32, #tpu.memory_space<vmem>>, %arg4: memref<16x39xf32, #tpu.memory_space<vmem>>) attributes {dimension_semantics = [#tpu.dimension_semantics<parallel>], iteration_bounds = array<i64: 1>, scalar_prefetch = 1 : i64, scratch_operands = 0 : i64, tpu.core_type = #tpu.core_type<tc>, window_params = [{transform_indices = @transform_0, window_bounds = array<i64: 16, 32>}, {transform_indices = @transform_1, window_bounds = array<i64: 16, 7>}, {transform_indices = @transform_2, window_bounds = array<i64: 16, 39>}]} {
    %c0 = arith.constant 0 : index
    %c0_0 = arith.constant 0 : index
    %0 = vector.load %arg2[%c0, %c0_0] : memref<16x32xf32, #tpu.memory_space<vmem>>, vector<16x32xf32>
    %c0_1 = arith.constant 0 : index
    %c0_2 = arith.constant 0 : index
    %1 = vector.load %arg4[%c0_1, %c0_2] : memref<16x39xf32, #tpu.memory_space<vmem>>, vector<16x32xf32>
    tpu.vector_store %arg4[%c0_1, %c0_2], %0 {strides = array<i32>} : memref<16x39xf32, #tpu.memory_space<vmem>>, vector<16x32xf32>,
    %c0_3 = arith.constant 0 : index
    %c0_4 = arith.constant 0 : index
    %2 = vector.load %arg3[%c0_3, %c0_4] : memref<16x7xf32, #tpu.memory_space<vmem>>, vector<16x7xf32>
    %3 = tpu.iota {dimensions = array<i32: 0>} : vector<16x7xi32>
    %c16_i32 = arith.constant 16 : i32
    %4 = arith.muli %arg0, %c16_i32 : i32
    %5 = vector.broadcast %4 : i32 to vector<16x7xi32>
    %6 = arith.addi %3, %5 : vector<16x7xi32>
    %7 = tpu.iota {dimensions = array<i32: 1>} : vector<16x7xi32>
    %c0_5 = arith.constant 0 : index
    %8 = memref.load %arg1[%c0_5] : memref<1xi32, #tpu.memory_space<smem>>
    %c-1640531535_i32 = arith.constant -1640531535 : i32
    %9 = vector.broadcast %c-1640531535_i32 : i32 to vector<16x7xi32>
    %10 = arith.muli %6, %9 : vector<16x7xi32>
    %c-2048144777_i32 = arith.constant -2048144777 : i32
    %11 = vector.broadcast %c-2048144777_i32 : i32 to vector<16x7xi32>
    %12 = arith.muli %7, %11 : vector<16x7xi32>
    %13 = arith.xori %10, %12 : vector<16x7xi32>
    %c-1028477379_i32 = arith.constant -1028477379 : i32
    %14 = arith.muli %8, %c-1028477379_i32 : i32
    %15 = vector.broadcast %14 : i32 to vector<16x7xi32>
    %16 = arith.xori %13, %15 : vector<16x7xi32>
    %c16_i32_6 = arith.constant 16 : i32
    %17 = vector.broadcast %c16_i32_6 : i32 to vector<16x7xi32>
    %18 = arith.shrui %16, %17 : vector<16x7xi32>
    %19 = arith.xori %16, %18 : vector<16x7xi32>
    %c2146121005_i32 = arith.constant 2146121005 : i32
    %20 = vector.broadcast %c2146121005_i32 : i32 to vector<16x7xi32>
    %21 = arith.muli %19, %20 : vector<16x7xi32>
    %c15_i32 = arith.constant 15 : i32
    %22 = vector.broadcast %c15_i32 : i32 to vector<16x7xi32>
    %23 = arith.shrui %21, %22 : vector<16x7xi32>
    %24 = arith.xori %21, %23 : vector<16x7xi32>
    %c-2073254261_i32 = arith.constant -2073254261 : i32
    %25 = vector.broadcast %c-2073254261_i32 : i32 to vector<16x7xi32>
    %26 = arith.muli %24, %25 : vector<16x7xi32>
    %c16_i32_7 = arith.constant 16 : i32
    %27 = vector.broadcast %c16_i32_7 : i32 to vector<16x7xi32>
    %28 = arith.shrui %26, %27 : vector<16x7xi32>
    %29 = arith.xori %26, %28 : vector<16x7xi32>
    %c668265263_i32 = arith.constant 668265263 : i32
    %30 = vector.broadcast %c668265263_i32 : i32 to vector<16x7xi32>
    %31 = arith.addi %29, %30 : vector<16x7xi32>
    %c16_i32_8 = arith.constant 16 : i32
    %32 = vector.broadcast %c16_i32_8 : i32 to vector<16x7xi32>
    %33 = arith.shrui %31, %32 : vector<16x7xi32>
    %34 = arith.xori %31, %33 : vector<16x7xi32>
    %c2146121005_i32_9 = arith.constant 2146121005 : i32
    %35 = vector.broadcast %c2146121005_i32_9 : i32 to vector<16x7xi32>
    %36 = arith.muli %34, %35 : vector<16x7xi32>
    %c15_i32_10 = arith.constant 15 : i32
    %37 = vector.broadcast %c15_i32_10 : i32 to vector<16x7xi32>
    %38 = arith.shrui %36, %37 : vector<16x7xi32>
    %39 = arith.xori %36, %38 : vector<16x7xi32>
    %c-2073254261_i32_11 = arith.constant -2073254261 : i32
    %40 = vector.broadcast %c-2073254261_i32_11 : i32 to vector<16x7xi32>
    %41 = arith.muli %39, %40 : vector<16x7xi32>
    %c16_i32_12 = arith.constant 16 : i32
    %42 = vector.broadcast %c16_i32_12 : i32 to vector<16x7xi32>
    %43 = arith.shrui %41, %42 : vector<16x7xi32>
    %44 = arith.xori %41, %43 : vector<16x7xi32>
    %c8_i32 = arith.constant 8 : i32
    %45 = vector.broadcast %c8_i32 : i32 to vector<16x7xi32>
    %46 = arith.shrui %44, %45 : vector<16x7xi32>
    %c15099494_i32 = arith.constant 15099494 : i32
    %47 = vector.broadcast %c15099494_i32 : i32 to vector<16x7xi32>
    %48 = arith.cmpi slt, %46, %47 : vector<16x7xi32>
    %cst = arith.constant 1.11111116 : f32
    %49 = vector.broadcast %cst : f32 to vector<16x7xf32>
    %50 = arith.mulf %2, %49 : vector<16x7xf32>
    %cst_13 = arith.constant 0.000000e+00 : f32
    %51 = vector.broadcast %cst_13 : f32 to vector<16x7xf32>
    %52 = arith.select %48, %50, %51 : vector<16x7xi1>, vector<16x7xf32>
    %c0_i32 = arith.constant 0 : i32
    %53 = vector.broadcast %c0_i32 : i32 to vector<16x7xi32>
    %54 = arith.cmpi sge, %7, %53 : vector<16x7xi32>
    %c3_i32 = arith.constant 3 : i32
    %55 = vector.broadcast %c3_i32 : i32 to vector<16x7xi32>
    %56 = arith.cmpi slt, %7, %55 : vector<16x7xi32>
    %57 = arith.andi %54, %56 : vector<16x7xi1>
    %58 = arith.select %57, %52, %2 : vector<16x7xi1>, vector<16x7xf32>
    %c0_14 = arith.constant 0 : index
    %c32 = arith.constant 32 : index
    %59 = vector.load %arg4[%c0_14, %c32] : memref<16x39xf32, #tpu.memory_space<vmem>>, vector<16x7xf32>
    tpu.vector_store %arg4[%c0_14, %c32], %58 {strides = array<i32>} : memref<16x39xf32, #tpu.memory_space<vmem>>, vector<16x7xf32>,
    return
  }
  func.func @transform_0(%arg0: i32, %arg1: memref<1xi32, #tpu.memory_space<smem>>) -> (i32, i32) {
    %c0_i32 = arith.constant 0 : i32
    %c0_i32_0 = arith.constant 0 : i32
    return %arg0, %c0_i32 : i32, i32
  }
  func.func @transform_1(%arg0: i32, %arg1: memref<1xi32, #tpu.memory_space<smem>>) -> (i32, i32) {
    %c0_i32 = arith.constant 0 : i32
    %c0_i32_0 = arith.constant 0 : i32
    return %arg0, %c0_i32 : i32, i32
  }
  func.func @transform_2(%arg0: i32, %arg1: memref<1xi32, #tpu.memory_space<smem>>) -> (i32, i32) {
    %c0_i32 = arith.constant 0 : i32
    %c0_i32_0 = arith.constant 0 : i32
    return %arg0, %c0_i32 : i32, i32
  }
}

</mosaic_0001>

<llo_original>
// kernel: tpu_custom_call.1
$region0: #{tpu_custom_call.1}
  #allocation0 [shape = 'u32[]', space=smem, size = 0x4, offset = 0x4, fixed_abs, tag = 'smem constant byte address 0x4 - core index']
  #allocation1 [shape = 'u32[144,128]{1,0:T(1,128)}', space=vmem, size = 0x12000, scoped, tag = 'internal scratch']
  #allocation2 [shape = 's32[1]{0}', space=sflag, size = 0x4, scoped, tag = 'scoped memory for tpu_custom_call.1']
  #allocation3 [shape = 's32[1]{0:T(128)S(6)}', space=smem, size = 0x200, scoped, tag = 'prefetched SMEM operand 0']
  %s0 = inlined_call_operand.<no memory space> [shape: s32[1], index: 0, kind: input, shape index: {}]
  %s1 = inlined_call_operand.vmem [shape: f32[16,32], index: 1, kind: input, shape index: {}]
  %s2 = inlined_call_operand.vmem [shape: f32[16,7], index: 2, kind: input, shape index: {}]
  %s3 = inlined_call_operand.hbm [shape: f32[16,39], index: 3, kind: output, shape index: {}]
  %s4 = sld [smem:[#allocation0]]
  $region18: #{tpu_custom_call.1} parent=0
    _
  %s6 = ssub.s32 1, %s4
  %s7 = scalar_select 0, %s6, %s4
  %8 = sst [smem:[#allocation3]] %s0
  $region1: #{tpu_custom_call.1} parent=0
    #allocation4 [shape = 'u8[8192]{0}', space=vmem, size = 0x2000, scoped, tag = 'output window, operand 0, single buffered']
    #allocation5 [shape = 's32[1]{0}', space=sflag, size = 0x4, scoped, tag = 'scoped memory for tpu_custom_call.1']
    %9 = vsyncpa [#allocation5], 0
    // Predicated region
    $region2: #{tpu_custom_call.1} parent=1 // pred_check
      _
    $region3: #{tpu_custom_call.1} parent=1 // pred_check_branch
      %11 = sbr.rel (0) target = $region5
    $region4: #{tpu_custom_call.1} parent=1 // pred_region
      _
    $region5: #{tpu_custom_call.1} parent=1 // pred_fallthru
      _
    // Predicated region
    $region6: #{tpu_custom_call.1} parent=1 // pred_check
      _
    $region7: #{tpu_custom_call.1} parent=1 // pred_check_branch
      %13 = sbr.rel (0) target = $region9
    $region8: #{tpu_custom_call.1} parent=1 // pred_region
      _
    $region9: #{tpu_custom_call.1} parent=1 // pred_fallthru
      _
    %v14 = vld [vmem:[%s1] sm:$0xff]
    %v15 = vld [vmem:[%s1 + $0x8] sm:$0xff]
    %vm16 = vcmask 261120
    %17 = vst.msk [vmem:[#allocation4] sm:$0xff] %vm16, %v14
    %18 = vst.msk [vmem:[#allocation4 + $0x8] sm:$0xff] %vm16, %v15
    %v19 = vld [vmem:[%s2] sm:$0xff]
    %v20 = vld [vmem:[%s2 + $0x8] sm:$0xff]
    %v21 = vlaneseq
    %v22 = vshrl.u32 %v21, 7
    %v23 = vadd.s32 %v22, 8
    %s24 = smul.u32 0, 16
    %v25 = vstv %s24
    %v26 = vadd.s32 %v22, %v25
    %v27 = vadd.s32 %v23, %v25
    %v28 = vlaneseq
    %v29 = vand.u32 %v28, 127
    %s30 = sld [smem:[#allocation3]]
    %v31 = vmul.u32 %v26, 2654435761
    %v32 = vmul.u32 %v27, 2654435761
    %v33 = vmul.u32 %v29, 2246822519
    %v34 = vxor.u32 %v31, %v33
    %v35 = vxor.u32 %v32, %v33
    %s36 = smul.u32 %s30, 3266489917
    %v37 = vstv %s36
    %v38 = vxor.u32 %v34, %v37
    %v39 = vxor.u32 %v35, %v37
    %v40 = vshrl.u32 %v38, 16
    %v41 = vshrl.u32 %v39, 16
    %v42 = vxor.u32 %v38, %v40
    %v43 = vxor.u32 %v39, %v41
    %v44 = vmul.u32 %v42, 2146121005
    %v45 = vmul.u32 %v43, 2146121005
    %v46 = vshrl.u32 %v44, 15
    %v47 = vshrl.u32 %v45, 15
    %v48 = vxor.u32 %v44, %v46
    %v49 = vxor.u32 %v45, %v47
    %v50 = vmul.u32 %v48, 2221713035
    %v51 = vmul.u32 %v49, 2221713035
    %v52 = vshrl.u32 %v50, 16
    %v53 = vshrl.u32 %v51, 16
    %v54 = vxor.u32 %v50, %v52
    %v55 = vxor.u32 %v51, %v53
    %v56 = vadd.s32 %v54, 668265263
    %v57 = vadd.s32 %v55, 668265263
    %v58 = vshrl.u32 %v56, 16
    %v59 = vshrl.u32 %v57, 16
    %v60 = vxor.u32 %v56, %v58
    %v61 = vxor.u32 %v57, %v59
    %v62 = vmul.u32 %v60, 2146121005
    %v63 = vmul.u32 %v61, 2146121005
    %v64 = vshrl.u32 %v62, 15
    %v65 = vshrl.u32 %v63, 15
    %v66 = vxor.u32 %v62, %v64
    %v67 = vxor.u32 %v63, %v65
    %v68 = vmul.u32 %v66, 2221713035
    %v69 = vmul.u32 %v67, 2221713035
    %v70 = vshrl.u32 %v68, 16
    %v71 = vshrl.u32 %v69, 16
    %v72 = vxor.u32 %v68, %v70
    %v73 = vxor.u32 %v69, %v71
    %v74 = vshrl.u32 %v72, 8
    %v75 = vshrl.u32 %v73, 8
    %vm76 = vcmp.lt.s32.totalorder %v74, 15099494
    %vm77 = vcmp.lt.s32.totalorder %v75, 15099494
    %v78 = vmul.f32 %v19, 1.1111112
    %v79 = vmul.f32 %v20, 1.1111112
    %v80 = vsel %vm76, %v78, 0.0
    %v81 = vsel %vm77, %v79, 0.0
    %vm82 = vcmp.ge.s32.totalorder %v29, 0
    %vm83 = vcmp.lt.s32.totalorder %v29, 3
    %vm84 = vmand %vm82, %vm83
    %v85 = vsel %vm84, %v80, %v19
    %v86 = vsel %vm84, %v81, %v20
    %89 = vrot.lane.b32.xlu0 %v85, 32
    %v90 = vpop.permute.xlu0 %89
    %91 = vrot.lane.b32.xlu0 %v86, 32
    %v92 = vpop.permute.xlu0 %91
    %vm95 = vcmask 318720
    %96 = vst.msk [vmem:[#allocation4] sm:$0xff] %vm95, %v90
    %97 = vst.msk [vmem:[#allocation4 + $0x8] sm:$0xff] %vm95, %v92
    // Predicated region
    $region10: #{tpu_custom_call.1} parent=1 // pred_check
      _
    $region11: #{tpu_custom_call.1} parent=1 // pred_check_branch
      %99 = sbr.rel (0) target = $region13
    $region12: #{tpu_custom_call.1} parent=1 // pred_region
      %s101 = ssub.s32 256, 256
      %102 = vsyncadd [#allocation5], %s101
      %s103 = sshll.u32 [#allocation4], 4
      %s104 = int_to_ptr.vmem [resolvable:$true] %s103
      %109 = dma.vmem_to_hbm [thread:$0]  %s104, 256, %s3, [#allocation5], 128, 128, 8
    $region13: #{tpu_custom_call.1} parent=1 // pred_fallthru
      _
    // Predicated region
    $region14: #{tpu_custom_call.1} parent=1 // pred_check
      _
    $region15: #{tpu_custom_call.1} parent=1 // pred_check_branch
      %111 = sbr.rel (0) target = $region17
    $region16: #{tpu_custom_call.1} parent=1 // pred_region
      %112 = dma.done [#allocation5], 256
    $region17: #{tpu_custom_call.1} parent=1 // pred_fallthru
      _
    %113 = vsyncpa [#allocation5], 1

</llo_original>
